<compile_context>
chip_gen: v7x
topology: tpu7x:2x2x1
jax: 0.10.0
libtpu: 0.0.40
codegen_flags: <defaults>
</compile_context>

<pallas_src>
import functools

import jax
import jax.numpy as jnp
from jax.experimental import pallas as pl
from jax.experimental.pallas import tpu as pltpu


def _refl_gating_kernel(coef_ref, f_ref, o_ref):
    """One tile of points.

    coef_ref: SMEM f32[21]  = [M.flatten() (16), v (4), c (1)]
    f_ref:    VMEM f32[4, L] channels-major point data (rows: x, y, z, r)
    o_ref:    VMEM f32[1, L] refined reflectance (lane-dense)
    """
    f = f_ref[...]                                   # [4, L]
    ch = tuple(f[a:a + 1, :] for a in range(4))      # 4 x [1, L], lane-dense
    r = ch[3]                                        # reflectance channel

    # score = c + sum_a f[a] * (v[a] + sum_b M[a, b] * f[b])
    score = jnp.full_like(r, coef_ref[20])           # c = bq . bk
    for a in range(4):
        inner = jnp.full_like(r, coef_ref[16 + a])   # v[a]
        for b in range(4):
            inner = inner + coef_ref[4 * a + b] * ch[b]
        score = score + ch[a] * inner

    # Sigmoid gate (EUP) and elementwise rescale (VPU).
    o_ref[...] = r * jax.nn.sigmoid(score)


def _round_up(x, m):
    return ((x + m - 1) // m) * m


@functools.partial(jax.jit, static_argnames=("tile",))
def reflectance_gating_attention(xyz, reflectance, wq, bq, wk, bk, *, tile=16384):
    """
    xyz:          [N, 3] float32
    reflectance:  [N]    float32
    wq, wk:       [H, 4] float32  (PyTorch nn.Linear weight layout)
    bq, bk:       [H]    float32
    returns:      [N]    float32

    `tile` = points per grid step (rounded up to a multiple of 128).  For v7x
    (3.2 TB/s HBM) 32768 amortizes step overhead even better; 16384 is a good
    default for v5e/v6e.
    """
    n = xyz.shape[0]

    xyz = xyz.astype(jnp.float32)
    reflectance = reflectance.astype(jnp.float32)
    wq = wq.astype(jnp.float32)
    wk = wk.astype(jnp.float32)
    bq = bq.astype(jnp.float32)
    bk = bk.astype(jnp.float32)

    # Precompute quadratic-form coefficients (tiny, done once by XLA).
    m4 = wq.T @ wk                                   # [4, 4]  = Wq^T Wk
    v4 = wq.T @ bk + wk.T @ bq                       # [4]
    c0 = jnp.dot(bq, bk)                             # scalar
    coef = jnp.concatenate([m4.reshape(-1), v4, c0[None]])   # [21]

    # Channels-major, lane-dense point slab: rows are x, y, z, reflectance.
    lane_tile = min(_round_up(tile, 128), _round_up(n, 128))
    n_pad = _round_up(n, lane_tile)
    feats = jnp.concatenate([xyz.T, reflectance[None, :]], axis=0)   # [4, N]
    if n_pad != n:
        feats = jnp.pad(feats, ((0, 0), (0, n_pad - n)))             # [4, N_pad]

    grid = (n_pad // lane_tile,)
    out = pl.pallas_call(
        _refl_gating_kernel,
        out_shape=jax.ShapeDtypeStruct((1, n_pad), jnp.float32),
        grid=grid,
        in_specs=[
            # 21 scalar coefficients, whole array resident in SMEM.
            pl.BlockSpec(memory_space=pltpu.MemorySpace.SMEM),
            # Channels-major point tile: full-width, unmasked lane loads.
            pl.BlockSpec((4, lane_tile), lambda i: (0, i)),
        ],
        # Lane-dense output tile: unmasked full-width stores.
        out_specs=pl.BlockSpec((1, lane_tile), lambda i: (0, i)),
        compiler_params=pltpu.CompilerParams(
            dimension_semantics=("parallel",),      # shards grid across TCs on v7x
        ),
    )(coef, feats)

    return out[0, :n]


def _reference(xyz, reflectance, wq, bq, wk, bk):
    """Pure-JAX reference matching the PyTorch module."""
    features = jnp.concatenate([xyz, reflectance[:, None]], axis=-1)
    q = features @ wq.T + bq
    k = features @ wk.T + bk
    scores = jnp.sum(q * k, axis=-1, keepdims=True)
    weights = jax.nn.sigmoid(scores)
    return (reflectance[:, None] * weights)[:, 0]


if __name__ == "__main__":
    key = jax.random.PRNGKey(0)
    k_xyz, k_refl, k_wq, k_wk, k_bq, k_bk = jax.random.split(key, 6)

    N = 256          # number of points
    HIDDEN = 32      # hidden_dim

    xyz = jax.random.normal(k_xyz, (N, 3), dtype=jnp.float32)
    reflectance = jax.random.uniform(k_refl, (N,), dtype=jnp.float32)
    batch = jnp.zeros((N,), dtype=jnp.int32)  # unused by the forward math

    # PyTorch-layout parameters; weights ~ N(0, 0.02) per _initialize_weights.
    wq = 0.02 * jax.random.normal(k_wq, (HIDDEN, 4), dtype=jnp.float32)
    wk = 0.02 * jax.random.normal(k_wk, (HIDDEN, 4), dtype=jnp.float32)
    # Module default init is zero bias; also test nonzero biases to exercise
    # the linear and constant terms of the quadratic form.
    bias_cases = [
        (jnp.zeros((HIDDEN,), jnp.float32), jnp.zeros((HIDDEN,), jnp.float32)),
        (0.02 * jax.random.normal(k_bq, (HIDDEN,), dtype=jnp.float32),
         0.02 * jax.random.normal(k_bk, (HIDDEN,), dtype=jnp.float32)),
    ]

    for bq, bk in bias_cases:
        out = reflectance_gating_attention(xyz, reflectance, wq, bq, wk, bk)
        out = jax.block_until_ready(out)
        ref = _reference(xyz, reflectance, wq, bq, wk, bk)
        assert out.shape == (N,)
        assert jnp.allclose(out, ref, atol=1e-5, rtol=1e-5), "mismatch vs reference"

    print("KERNEL_OK")
</pallas_src>

<mosaic_0001>
module attributes {stable_mosaic.version = 11 : i64} {
  func.func @_refl_gating_kernel(%arg0: i32, %arg1: memref<21xf32, #tpu.memory_space<smem>>, %arg2: memref<4x256xf32, #tpu.memory_space<vmem>>, %arg3: memref<1x256xf32, #tpu.memory_space<vmem>>) attributes {dimension_semantics = [#tpu.dimension_semantics<parallel>], iteration_bounds = array<i64: 1>, scalar_prefetch = 0 : i64, scratch_operands = 0 : i64, tpu.core_type = #tpu.core_type<tc>, window_params = [{transform_indices = @transform_0, window_bounds = array<i64: 21>}, {transform_indices = @transform_1, window_bounds = array<i64: 4, 256>}, {transform_indices = @transform_2, window_bounds = array<i64: 1, 256>}]} {
    %c0 = arith.constant 0 : index
    %c0_0 = arith.constant 0 : index
    %0 = vector.load %arg2[%c0, %c0_0] : memref<4x256xf32, #tpu.memory_space<vmem>>, vector<4x256xf32>
    %1 = vector.extract_strided_slice %0 {offsets = [0, 0], sizes = [1, 256], strides = [1, 1]} : vector<4x256xf32> to vector<1x256xf32>
    %2 = vector.extract_strided_slice %0 {offsets = [1, 0], sizes = [1, 256], strides = [1, 1]} : vector<4x256xf32> to vector<1x256xf32>
    %3 = vector.extract_strided_slice %0 {offsets = [2, 0], sizes = [1, 256], strides = [1, 1]} : vector<4x256xf32> to vector<1x256xf32>
    %4 = vector.extract_strided_slice %0 {offsets = [3, 0], sizes = [1, 256], strides = [1, 1]} : vector<4x256xf32> to vector<1x256xf32>
    %c20 = arith.constant 20 : index
    %5 = memref.load %arg1[%c20] : memref<21xf32, #tpu.memory_space<smem>>
    %6 = vector.broadcast %5 : f32 to vector<1x256xf32>
    %c16 = arith.constant 16 : index
    %7 = memref.load %arg1[%c16] : memref<21xf32, #tpu.memory_space<smem>>
    %8 = vector.broadcast %7 : f32 to vector<1x256xf32>
    %c0_1 = arith.constant 0 : index
    %9 = memref.load %arg1[%c0_1] : memref<21xf32, #tpu.memory_space<smem>>
    %10 = vector.broadcast %9 : f32 to vector<1x256xf32>
    %11 = arith.mulf %10, %1 : vector<1x256xf32>
    %12 = arith.addf %8, %11 : vector<1x256xf32>
    %c1 = arith.constant 1 : index
    %13 = memref.load %arg1[%c1] : memref<21xf32, #tpu.memory_space<smem>>
    %14 = vector.broadcast %13 : f32 to vector<1x256xf32>
    %15 = arith.mulf %14, %2 : vector<1x256xf32>
    %16 = arith.addf %12, %15 : vector<1x256xf32>
    %c2 = arith.constant 2 : index
    %17 = memref.load %arg1[%c2] : memref<21xf32, #tpu.memory_space<smem>>
    %18 = vector.broadcast %17 : f32 to vector<1x256xf32>
    %19 = arith.mulf %18, %3 : vector<1x256xf32>
    %20 = arith.addf %16, %19 : vector<1x256xf32>
    %c3 = arith.constant 3 : index
    %21 = memref.load %arg1[%c3] : memref<21xf32, #tpu.memory_space<smem>>
    %22 = vector.broadcast %21 : f32 to vector<1x256xf32>
    %23 = arith.mulf %22, %4 : vector<1x256xf32>
    %24 = arith.addf %20, %23 : vector<1x256xf32>
    %25 = arith.mulf %1, %24 : vector<1x256xf32>
    %26 = arith.addf %6, %25 : vector<1x256xf32>
    %c17 = arith.constant 17 : index
    %27 = memref.load %arg1[%c17] : memref<21xf32, #tpu.memory_space<smem>>
    %28 = vector.broadcast %27 : f32 to vector<1x256xf32>
    %c4 = arith.constant 4 : index
    %29 = memref.load %arg1[%c4] : memref<21xf32, #tpu.memory_space<smem>>
    %30 = vector.broadcast %29 : f32 to vector<1x256xf32>
    %31 = arith.mulf %30, %1 : vector<1x256xf32>
    %32 = arith.addf %28, %31 : vector<1x256xf32>
    %c5 = arith.constant 5 : index
    %33 = memref.load %arg1[%c5] : memref<21xf32, #tpu.memory_space<smem>>
    %34 = vector.broadcast %33 : f32 to vector<1x256xf32>
    %35 = arith.mulf %34, %2 : vector<1x256xf32>
    %36 = arith.addf %32, %35 : vector<1x256xf32>
    %c6 = arith.constant 6 : index
    %37 = memref.load %arg1[%c6] : memref<21xf32, #tpu.memory_space<smem>>
    %38 = vector.broadcast %37 : f32 to vector<1x256xf32>
    %39 = arith.mulf %38, %3 : vector<1x256xf32>
    %40 = arith.addf %36, %39 : vector<1x256xf32>
    %c7 = arith.constant 7 : index
    %41 = memref.load %arg1[%c7] : memref<21xf32, #tpu.memory_space<smem>>
    %42 = vector.broadcast %41 : f32 to vector<1x256xf32>
    %43 = arith.mulf %42, %4 : vector<1x256xf32>
    %44 = arith.addf %40, %43 : vector<1x256xf32>
    %45 = arith.mulf %2, %44 : vector<1x256xf32>
    %46 = arith.addf %26, %45 : vector<1x256xf32>
    %c18 = arith.constant 18 : index
    %47 = memref.load %arg1[%c18] : memref<21xf32, #tpu.memory_space<smem>>
    %48 = vector.broadcast %47 : f32 to vector<1x256xf32>
    %c8 = arith.constant 8 : index
    %49 = memref.load %arg1[%c8] : memref<21xf32, #tpu.memory_space<smem>>
    %50 = vector.broadcast %49 : f32 to vector<1x256xf32>
    %51 = arith.mulf %50, %1 : vector<1x256xf32>
    %52 = arith.addf %48, %51 : vector<1x256xf32>
    %c9 = arith.constant 9 : index
    %53 = memref.load %arg1[%c9] : memref<21xf32, #tpu.memory_space<smem>>
    %54 = vector.broadcast %53 : f32 to vector<1x256xf32>
    %55 = arith.mulf %54, %2 : vector<1x256xf32>
    %56 = arith.addf %52, %55 : vector<1x256xf32>
    %c10 = arith.constant 10 : index
    %57 = memref.load %arg1[%c10] : memref<21xf32, #tpu.memory_space<smem>>
    %58 = vector.broadcast %57 : f32 to vector<1x256xf32>
    %59 = arith.mulf %58, %3 : vector<1x256xf32>
    %60 = arith.addf %56, %59 : vector<1x256xf32>
    %c11 = arith.constant 11 : index
    %61 = memref.load %arg1[%c11] : memref<21xf32, #tpu.memory_space<smem>>
    %62 = vector.broadcast %61 : f32 to vector<1x256xf32>
    %63 = arith.mulf %62, %4 : vector<1x256xf32>
    %64 = arith.addf %60, %63 : vector<1x256xf32>
    %65 = arith.mulf %3, %64 : vector<1x256xf32>
    %66 = arith.addf %46, %65 : vector<1x256xf32>
    %c19 = arith.constant 19 : index
    %67 = memref.load %arg1[%c19] : memref<21xf32, #tpu.memory_space<smem>>
    %68 = vector.broadcast %67 : f32 to vector<1x256xf32>
    %c12 = arith.constant 12 : index
    %69 = memref.load %arg1[%c12] : memref<21xf32, #tpu.memory_space<smem>>
    %70 = vector.broadcast %69 : f32 to vector<1x256xf32>
    %71 = arith.mulf %70, %1 : vector<1x256xf32>
    %72 = arith.addf %68, %71 : vector<1x256xf32>
    %c13 = arith.constant 13 : index
    %73 = memref.load %arg1[%c13] : memref<21xf32, #tpu.memory_space<smem>>
    %74 = vector.broadcast %73 : f32 to vector<1x256xf32>
    %75 = arith.mulf %74, %2 : vector<1x256xf32>
    %76 = arith.addf %72, %75 : vector<1x256xf32>
    %c14 = arith.constant 14 : index
    %77 = memref.load %arg1[%c14] : memref<21xf32, #tpu.memory_space<smem>>
    %78 = vector.broadcast %77 : f32 to vector<1x256xf32>
    %79 = arith.mulf %78, %3 : vector<1x256xf32>
    %80 = arith.addf %76, %79 : vector<1x256xf32>
    %c15 = arith.constant 15 : index
    %81 = memref.load %arg1[%c15] : memref<21xf32, #tpu.memory_space<smem>>
    %82 = vector.broadcast %81 : f32 to vector<1x256xf32>
    %83 = arith.mulf %82, %4 : vector<1x256xf32>
    %84 = arith.addf %80, %83 : vector<1x256xf32>
    %85 = arith.mulf %4, %84 : vector<1x256xf32>
    %86 = arith.addf %66, %85 : vector<1x256xf32>
    %87 = arith.negf %86 : vector<1x256xf32>
    %88 = math.exp %87 : vector<1x256xf32>
    %cst = arith.constant 1.000000e+00 : f32
    %89 = vector.broadcast %cst : f32 to vector<1x256xf32>
    %90 = arith.addf %89, %88 : vector<1x256xf32>
    %91 = arith.divf %89, %90 : vector<1x256xf32>
    %92 = arith.mulf %4, %91 : vector<1x256xf32>
    %c0_2 = arith.constant 0 : index
    %c0_3 = arith.constant 0 : index
    %93 = vector.load %arg3[%c0_2, %c0_3] : memref<1x256xf32, #tpu.memory_space<vmem>>, vector<1x256xf32>
    tpu.vector_store %arg3[%c0_2, %c0_3], %92 {strides = array<i32>} : memref<1x256xf32, #tpu.memory_space<vmem>>, vector<1x256xf32>,
    return
  }
  func.func @transform_0(%arg0: i32) -> i32 {
    %c0_i32 = arith.constant 0 : i32
    %c0_i32_0 = arith.constant 0 : i32
    return %c0_i32 : i32
  }
  func.func @transform_1(%arg0: i32) -> (i32, i32) {
    %c0_i32 = arith.constant 0 : i32
    %c0_i32_0 = arith.constant 0 : i32
    return %c0_i32, %arg0 : i32, i32
  }
  func.func @transform_2(%arg0: i32) -> (i32, i32) {
    %c0_i32 = arith.constant 0 : i32
    %c0_i32_0 = arith.constant 0 : i32
    return %c0_i32, %arg0 : i32, i32
  }
}

</mosaic_0001>

<llo_original>
// kernel: reflectance_gating_attention.1
$region0: #{reflectance_gating_attention.1}
  #allocation0 [shape = 'u32[]', space=smem, size = 0x4, offset = 0x4, fixed_abs, tag = 'smem constant byte address 0x4 - core index']
  #allocation1 [shape = 'u32[144,128]{1,0:T(1,128)}', space=vmem, size = 0x12000, scoped, tag = 'internal scratch']
  %s0 = inlined_call_operand.vmem [shape: f32[21], index: 0, kind: input, shape index: {}]
  %s1 = inlined_call_operand.vmem [shape: f32[4,256], index: 1, kind: input, shape index: {}]
  %s2 = inlined_call_operand.hbm [shape: f32[1,256], index: 2, kind: output, shape index: {}]
  %s3 = sld [smem:[#allocation0]]
  $region22: #{reflectance_gating_attention.1} parent=0
    _
  %s5 = ssub.s32 1, %s3
  %s6 = scalar_select 0, %s5, %s3
  $region1: #{reflectance_gating_attention.1} parent=0
    #allocation2 [shape = 'u8[512]{0}', space=smem, size = 0x200, scoped, tag = 'input window, operand 0, single buffered']
    #allocation3 [shape = 's32[1]{0}', space=sflag, size = 0x4, scoped, tag = 'scoped memory for reflectance_gating_attention.1']
    #allocation4 [shape = 's32[1]{0}', space=sflag, size = 0x4, scoped, tag = 'scoped memory for reflectance_gating_attention.1']
    #allocation5 [shape = 'u8[1024]{0}', space=vmem, size = 0x400, scoped, tag = 'output window, operand 0, single buffered']
    %7 = vsyncpa [#allocation4], 0
    %8 = vsyncpa [#allocation3], 0
    // Predicated region
    $region2: #{reflectance_gating_attention.1} parent=1 // pred_check
      _
    $region3: #{reflectance_gating_attention.1} parent=1 // pred_check_branch
      %10 = sbr.rel (0) target = $region5
    $region4: #{reflectance_gating_attention.1} parent=1 // pred_region
      %s12 = ssub.s32 16, 16
      %13 = vsyncadd [#allocation4], %s12
      %s15 = sshll.u32 %s0, 4
      %s16 = int_to_ptr.vmem [resolvable:$true] %s15
      %18 = dma.vmem_to_smem %s16, 16, [#allocation2], [#allocation4]
    $region5: #{reflectance_gating_attention.1} parent=1 // pred_fallthru
      _
    // Predicated region
    $region6: #{reflectance_gating_attention.1} parent=1 // pred_check
      _
    $region7: #{reflectance_gating_attention.1} parent=1 // pred_check_branch
      %20 = sbr.rel (0) target = $region9
    $region8: #{reflectance_gating_attention.1} parent=1 // pred_region
      _
    $region9: #{reflectance_gating_attention.1} parent=1 // pred_fallthru
      _
    // Predicated region
    $region10: #{reflectance_gating_attention.1} parent=1 // pred_check
      _
    $region11: #{reflectance_gating_attention.1} parent=1 // pred_check_branch
      %22 = sbr.rel (0) target = $region13
    $region12: #{reflectance_gating_attention.1} parent=1 // pred_region
      %23 = dma.done [#allocation4], 16
    $region13: #{reflectance_gating_attention.1} parent=1 // pred_fallthru
      _
    %24 = sfence
    %v25 = vld [vmem:[%s1] sm:$0xff]
    %s26 = sld [smem:[#allocation2 + $0x14]]
    %v27 = vstv %s26
    %s28 = sld [smem:[#allocation2 + $0x10]]
    %v29 = vstv %s28
    %s30 = sld [smem:[#allocation2]]
    %v31 = vstv %s30
    %v32 = vmul.f32 %v31, %v25
    %v33 = vadd.f32 %v29, %v32
    %s34 = sld [smem:[#allocation2 + $0x1]]
    %v35 = vstv %s34
    %v36 = vmul.f32 %v35, %v25
    %v38 = vrot.slane %v36, 5
    %v39 = vrot.slane %v38, 4
    %v41 = vadd.f32 %v33, %v39
    %s42 = sld [smem:[#allocation2 + $0x2]]
    %v43 = vstv %s42
    %v44 = vmul.f32 %v43, %v25
    %v46 = vrot.slane %v44, 6
    %v47 = vrot.slane %v46, 4
    %v49 = vadd.f32 %v41, %v47
    %s50 = sld [smem:[#allocation2 + $0x3]]
    %v51 = vstv %s50
    %v52 = vmul.f32 %v51, %v25
    %v54 = vrot.slane %v52, 7
    %v55 = vrot.slane %v54, 4
    %v57 = vadd.f32 %v49, %v55
    %v58 = vmul.f32 %v25, %v57
    %v59 = vadd.f32 %v27, %v58
    %s60 = sld [smem:[#allocation2 + $0x11]]
    %v61 = vstv %s60
    %s62 = sld [smem:[#allocation2 + $0x4]]
    %v63 = vstv %s62
    %v64 = vmul.f32 %v63, %v25
    %v65 = vadd.f32 %v61, %v64
    %s66 = sld [smem:[#allocation2 + $0x5]]
    %v67 = vstv %s66
    %v68 = vmul.f32 %v67, %v25
    %v70 = vrot.slane %v68, 5
    %v71 = vrot.slane %v70, 4
    %v73 = vadd.f32 %v65, %v71
    %s74 = sld [smem:[#allocation2 + $0x6]]
    %v75 = vstv %s74
    %v76 = vmul.f32 %v75, %v25
    %v78 = vrot.slane %v76, 6
    %v79 = vrot.slane %v78, 4
    %v81 = vadd.f32 %v73, %v79
    %s82 = sld [smem:[#allocation2 + $0x7]]
    %v83 = vstv %s82
    %v84 = vmul.f32 %v83, %v25
    %v86 = vrot.slane %v84, 7
    %v87 = vrot.slane %v86, 4
    %v89 = vadd.f32 %v81, %v87
    %v91 = vrot.slane %v89, 7
    %v93 = vmul.f32 %v25, %v91
    %v95 = vrot.slane %v93, 5
    %v96 = vrot.slane %v95, 4
    %v98 = vadd.f32 %v59, %v96
    %s99 = sld [smem:[#allocation2 + $0x12]]
    %v100 = vstv %s99
    %s101 = sld [smem:[#allocation2 + $0x8]]
    %v102 = vstv %s101
    %v103 = vmul.f32 %v102, %v25
    %v104 = vadd.f32 %v100, %v103
    %s105 = sld [smem:[#allocation2 + $0x9]]
    %v106 = vstv %s105
    %v107 = vmul.f32 %v106, %v25
    %v109 = vrot.slane %v107, 5
    %v110 = vrot.slane %v109, 4
    %v112 = vadd.f32 %v104, %v110
    %s113 = sld [smem:[#allocation2 + $0xa]]
    %v114 = vstv %s113
    %v115 = vmul.f32 %v114, %v25
    %v117 = vrot.slane %v115, 6
    %v118 = vrot.slane %v117, 4
    %v120 = vadd.f32 %v112, %v118
    %s121 = sld [smem:[#allocation2 + $0xb]]
    %v122 = vstv %s121
    %v123 = vmul.f32 %v122, %v25
    %v125 = vrot.slane %v123, 7
    %v126 = vrot.slane %v125, 4
    %v128 = vadd.f32 %v120, %v126
    %v130 = vrot.slane %v128, 6
    %v132 = vmul.f32 %v25, %v130
    %v134 = vrot.slane %v132, 6
    %v135 = vrot.slane %v134, 4
    %v137 = vadd.f32 %v98, %v135
    %s138 = sld [smem:[#allocation2 + $0x13]]
    %v139 = vstv %s138
    %s140 = sld [smem:[#allocation2 + $0xc]]
    %v141 = vstv %s140
    %v142 = vmul.f32 %v141, %v25
    %v143 = vadd.f32 %v139, %v142
    %s144 = sld [smem:[#allocation2 + $0xd]]
    %v145 = vstv %s144
    %v146 = vmul.f32 %v145, %v25
    %v148 = vrot.slane %v146, 5
    %v149 = vrot.slane %v148, 4
    %v151 = vadd.f32 %v143, %v149
    %s152 = sld [smem:[#allocation2 + $0xe]]
    %v153 = vstv %s152
    %v154 = vmul.f32 %v153, %v25
    %v156 = vrot.slane %v154, 6
    %v157 = vrot.slane %v156, 4
    %v159 = vadd.f32 %v151, %v157
    %s160 = sld [smem:[#allocation2 + $0xf]]
    %v161 = vstv %s160
    %v162 = vmul.f32 %v161, %v25
    %v164 = vrot.slane %v162, 7
    %v165 = vrot.slane %v164, 4
    %v167 = vadd.f32 %v159, %v165
    %v169 = vrot.slane %v167, 5
    %v171 = vmul.f32 %v25, %v169
    %v173 = vrot.slane %v171, 7
    %v174 = vrot.slane %v173, 4
    %v176 = vadd.f32 %v137, %v174
    %v177 = vxor.u32 %v176, 2147483648
    %v178 = vmul.f32 %v177, 1.442695
    %v179 = vpow.pop %v178
    %v180 = vadd.f32 %v179, 1.0
    %v181 = vrcp.pop %v180
    %v182 = vmul.f32 1.0, %v181
    %v184 = vrot.slane %v182, 5
    %v186 = vmul.f32 %v25, %v184
    %v189 = vunpack.c.l.s4 1966171168
    %v190 = vunpack.c.0.s8 %v189
    %v191 = vlaneseq
    %v192 = vshrl.u32 %v191, 7
    %v193 = vsub.s32 %v190, %v192
    %v194 = vrot.slane %v186, %v193
    %v195 = vcombine.high %v194, %v194
    %v197 = vunpack.c.l.s4 1966171168
    %v198 = vunpack.c.0.s8 %v197
    %v199 = vlaneseq
    %v200 = vshrl.u32 %v199, 7
    %v201 = vsub.s32 %v198, %v200
    %v202 = vrot.slane %v195, %v201
    %v203 = vcombine.high %v202, %v202
    %v205 = vlaneseq
    %vm206 = vcmp.ge.s32.totalorder %v205, 0
    %vm207 = vcmp.lt.s32.totalorder %v205, 256
    %vm208 = vmand %vm206, %vm207
    %209 = vst.msk [vmem:[#allocation5] sm:$0x3] %vm208, %v203
    // Predicated region
    $region14: #{reflectance_gating_attention.1} parent=1 // pred_check
      _
    $region15: #{reflectance_gating_attention.1} parent=1 // pred_check_branch
      %211 = sbr.rel (0) target = $region17
    $region16: #{reflectance_gating_attention.1} parent=1 // pred_region
      %s213 = ssub.s32 32, 32
      %214 = vsyncadd [#allocation3], %s213
      %s216 = sshll.u32 [#allocation5], 4
      %s217 = int_to_ptr.vmem [resolvable:$true] %s216
      %219 = dma.vmem_to_hbm [thread:$0]  %s217, 32, %s2, [#allocation3]
    $region17: #{reflectance_gating_attention.1} parent=1 // pred_fallthru
      _
    // Predicated region
    $region18: #{reflectance_gating_attention.1} parent=1 // pred_check
      _
    $region19: #{reflectance_gating_attention.1} parent=1 // pred_check_branch
      %221 = sbr.rel (0) target = $region21
    $region20: #{reflectance_gating_attention.1} parent=1 // pred_region
      %222 = dma.done [#allocation3], 32
    $region21: #{reflectance_gating_attention.1} parent=1 // pred_fallthru
      _
    %223 = vsyncpa [#allocation3], 1
    %224 = vsyncpa [#allocation4], 1

</llo_original>
